<compile_context>
chip_gen: v7x
topology: tpu7x:2x2x1
jax: 0.10.0
libtpu: 0.0.40
codegen_flags: <defaults>
</compile_context>

<pallas_src>
import functools

import jax
import jax.numpy as jnp
from jax.experimental import pallas as pl
from jax.experimental.pallas import tpu as pltpu


def lstm_classifier_kernel(x_ref, wg_ref, bg_ref, wout_ref, bout_ref, out_ref,
                           *, hidden_size):
    H = hidden_size
    x = x_ref[...]                                                   # (T, E) bf16

    # Fused gate pre-activations: one MXU matmul producing [i | g | o] lanes.
    # (h0 = 0 so the recurrent W_hh term is absent; b_ih + b_hh folded in wrapper.)
    gates = jnp.dot(x, wg_ref[...],
                    preferred_element_type=jnp.float32) + bg_ref[...]  # (T, 3H) f32

    gi = gates[:, 0 * H:1 * H]
    gg = gates[:, 1 * H:2 * H]
    go = gates[:, 2 * H:3 * H]
    # forget gate omitted: f * c0 == 0 because c0 == 0

    i_g = jax.nn.sigmoid(gi)
    g_g = jnp.tanh(gg)
    o_g = jax.nn.sigmoid(go)

    c = i_g * g_g
    h = o_g * jnp.tanh(c)                                            # (T, H) f32

    # hidden2action linear layer (class dim padded to 128 lanes; padded bias is
    # -1e30 so those lanes contribute exp(...) == 0 to the softmax).
    logits = jnp.dot(h.astype(jnp.bfloat16), wout_ref[...],
                     preferred_element_type=jnp.float32) + bout_ref[...]  # (T, 128)

    # softmax over the (padded) class dim
    m = jnp.max(logits, axis=-1, keepdims=True)
    e = jnp.exp(logits - m)
    denom = jnp.sum(e, axis=-1, keepdims=True)
    out_ref[...] = e * pl.reciprocal(denom, approx=True)


def _round_up(a, b):
    return ((a + b - 1) // b) * b


O_PAD = 128  # lane-dense output width


def lstm_classifier_forward(token_ids, params):
    """Glue: embedding gather + parameter repacking, then one pallas_call."""
    # TODO(synk): at large N the embedding gather could be fused via
    # PrefetchScalarGridSpec(num_scalar_prefetch=1) + pl.Element row indexing;
    # at these sizes jnp.take in the wrapper is negligible.
    emb = params["emb"]                                # (V, E), row 0 zero (padding_idx=0)
    x = jnp.take(emb, token_ids, axis=0)               # (N, E) f32
    n, e = x.shape
    H = params["w_hh"].shape[1]
    odim = params["w_out"].shape[0]

    # --- tiling over rows (each row is an independent LSTM "batch" element) ---
    tile_n = min(512, _round_up(n, 16))                # multiple of 16 for bf16 sublanes
    grid_n = pl.cdiv(n, tile_n)
    n_pad = grid_n * tile_n
    x = jnp.pad(x, ((0, n_pad - n), (0, 0)))           # padded rows sliced off below
    x = x.astype(jnp.bfloat16)

    # --- fuse gate weights: PyTorch gate order in weight_ih_l0 is [i, f, g, o] ---
    w_ih = params["w_ih"]                              # (4H, E)
    b = params["b_ih"] + params["b_hh"]                # (4H,)
    wg = jnp.concatenate([w_ih[0 * H:1 * H],           # i
                          w_ih[2 * H:3 * H],           # g
                          w_ih[3 * H:4 * H]],          # o
                         axis=0).T                     # (E, 3H)
    wg = wg.astype(jnp.bfloat16)
    bg = jnp.concatenate([b[0 * H:1 * H],
                          b[2 * H:3 * H],
                          b[3 * H:4 * H]]).reshape(1, 3 * H).astype(jnp.float32)

    # --- output projection, class dim padded to a lane-dense 128 ---
    wout = jnp.zeros((H, O_PAD), jnp.bfloat16)
    wout = wout.at[:, :odim].set(params["w_out"].T.astype(jnp.bfloat16))
    bout = jnp.full((1, O_PAD), -1e30, jnp.float32)    # padded logits -> exp() == 0
    bout = bout.at[0, :odim].set(params["b_out"].astype(jnp.float32))

    grid_spec = pltpu.PrefetchScalarGridSpec(
        num_scalar_prefetch=0,
        grid=(grid_n,),
        in_specs=[
            pl.BlockSpec((tile_n, e), lambda i: (i, 0)),        # x tile, pipelined
            pl.BlockSpec((e, 3 * H), lambda i: (0, 0)),         # resident weights
            pl.BlockSpec((1, 3 * H), lambda i: (0, 0)),
            pl.BlockSpec((H, O_PAD), lambda i: (0, 0)),
            pl.BlockSpec((1, O_PAD), lambda i: (0, 0)),
        ],
        out_specs=pl.BlockSpec((tile_n, O_PAD), lambda i: (i, 0)),
    )

    out = pl.pallas_call(
        functools.partial(lstm_classifier_kernel, hidden_size=H),
        out_shape=jax.ShapeDtypeStruct((n_pad, O_PAD), jnp.float32),
        grid_spec=grid_spec,
        compiler_params=pltpu.CompilerParams(
            dimension_semantics=("parallel",)),      # rows independent -> dual-TC on v7x
    )(x, wg, bg, wout, bout)

    return out[:n, :odim]


def reference_forward(token_ids, params):
    """Pure-JAX f32 reference (same math as the PyTorch module, hidden=None)."""
    x = jnp.take(params["emb"], token_ids, axis=0)
    H = params["w_hh"].shape[1]
    w_ih = params["w_ih"]
    b = params["b_ih"] + params["b_hh"]
    gi = x @ w_ih[0 * H:1 * H].T + b[0 * H:1 * H]
    gg = x @ w_ih[2 * H:3 * H].T + b[2 * H:3 * H]
    go = x @ w_ih[3 * H:4 * H].T + b[3 * H:4 * H]
    i_g = jax.nn.sigmoid(gi)
    g_g = jnp.tanh(gg)
    o_g = jax.nn.sigmoid(go)
    h = o_g * jnp.tanh(i_g * g_g)
    logits = h @ params["w_out"].T + params["b_out"]
    return jax.nn.softmax(logits, axis=-1)


def make_params(key, vocab_size, emb_size, input_size, hidden_size, output_size):
    assert emb_size == input_size, "reshape(1, N, -1) implies input_size == emb_size"
    ks = jax.random.split(key, 6)
    emb = jax.random.normal(ks[0], (vocab_size, emb_size), jnp.float32) * 0.1
    emb = emb.at[0].set(0.0)                            # padding_idx=0
    w_ih = jax.random.normal(ks[1], (4 * hidden_size, input_size), jnp.float32) * 0.1
    w_hh = jax.random.normal(ks[2], (4 * hidden_size, hidden_size), jnp.float32) * 0.1
    b_ih = jax.random.normal(ks[3], (4 * hidden_size,), jnp.float32) * 0.1
    b_hh = jax.random.normal(ks[4], (4 * hidden_size,), jnp.float32) * 0.1
    w_out = jax.random.normal(ks[5], (output_size, hidden_size), jnp.float32) * 0.1
    b_out = jnp.zeros((output_size,), jnp.float32)
    return dict(emb=emb, w_ih=w_ih, w_hh=w_hh, b_ih=b_ih, b_hh=b_hh,
                w_out=w_out, b_out=b_out)


if __name__ == "__main__":
    # Small deterministic config
    vocab_size, emb_size, input_size = 20, 32, 32
    hidden_size, output_size = 32, 16
    num_words = 8

    key = jax.random.PRNGKey(0)
    pkey, ikey = jax.random.split(key)
    params = make_params(pkey, vocab_size, emb_size, input_size,
                         hidden_size, output_size)
    token_ids = jax.random.randint(ikey, (num_words,), 0, vocab_size, jnp.int32)

    out = lstm_classifier_forward(token_ids, params)
    out = jax.block_until_ready(out)

    assert out.shape == (num_words, output_size)
    # rows of a softmax must sum to 1 (approx reciprocal -> loose tolerance)
    assert jnp.allclose(jnp.sum(out, axis=-1), 1.0, atol=2e-3)
    # match the pure-JAX f32 reference within bf16-matmul tolerance
    ref = reference_forward(token_ids, params)
    assert jnp.allclose(out, ref, atol=5e-3, rtol=5e-2)

    # TODO(synk): persistent `self.hidden` carry across calls (stateful hidden) is
    # not modeled; only the hidden=None (zero-state) forward path is implemented.
    print("KERNEL_OK")
</pallas_src>

<mosaic_0001>
module attributes {stable_mosaic.version = 11 : i64} {
  func.func @lstm_classifier_kernel(%arg0: i32, %arg1: memref<16x32xbf16, #tpu.memory_space<vmem>>, %arg2: memref<32x96xbf16, #tpu.memory_space<vmem>>, %arg3: memref<1x96xf32, #tpu.memory_space<vmem>>, %arg4: memref<32x128xbf16, #tpu.memory_space<vmem>>, %arg5: memref<1x128xf32, #tpu.memory_space<vmem>>, %arg6: memref<16x128xf32, #tpu.memory_space<vmem>>) attributes {dimension_semantics = [#tpu.dimension_semantics<parallel>], iteration_bounds = array<i64: 1>, scalar_prefetch = 0 : i64, scratch_operands = 0 : i64, tpu.core_type = #tpu.core_type<tc>, window_params = [{transform_indices = @transform_0, window_bounds = array<i64: 16, 32>}, {pipeline_mode = #tpu.pipeline_mode<synchronous>, transform_indices = @transform_1, window_bounds = array<i64: 32, 96>}, {pipeline_mode = #tpu.pipeline_mode<synchronous>, transform_indices = @transform_2, window_bounds = array<i64: 1, 96>}, {pipeline_mode = #tpu.pipeline_mode<synchronous>, transform_indices = @transform_3, window_bounds = array<i64: 32, 128>}, {pipeline_mode = #tpu.pipeline_mode<synchronous>, transform_indices = @transform_4, window_bounds = array<i64: 1, 128>}, {transform_indices = @transform_5, window_bounds = array<i64: 16, 128>}]} {
    %c0 = arith.constant 0 : index
    %c0_0 = arith.constant 0 : index
    %0 = vector.load %arg1[%c0, %c0_0] : memref<16x32xbf16, #tpu.memory_space<vmem>>, vector<16x32xbf16>
    %c0_1 = arith.constant 0 : index
    %c0_2 = arith.constant 0 : index
    %1 = vector.load %arg2[%c0_1, %c0_2] : memref<32x96xbf16, #tpu.memory_space<vmem>>, vector<32x96xbf16>
    %cst = arith.constant dense<0.000000e+00> : vector<16x96xf32>
    %2 = tpu.matmul %0, %1, %cst {dimension_numbers = #tpu.dot_dimension_numbers<[1], [0], [0], [1], [0, 0, 1, 1], [], []>} : vector<16x32xbf16>, vector<32x96xbf16>, vector<16x96xf32> -> vector<16x96xf32>
    %c0_3 = arith.constant 0 : index
    %c0_4 = arith.constant 0 : index
    %3 = vector.load %arg3[%c0_3, %c0_4] : memref<1x96xf32, #tpu.memory_space<vmem>>, vector<1x96xf32>
    %4 = vector.broadcast %3 : vector<1x96xf32> to vector<16x96xf32>
    %5 = arith.addf %2, %4 : vector<16x96xf32>
    %6 = vector.extract_strided_slice %5 {offsets = [0, 0], sizes = [16, 32], strides = [1, 1]} : vector<16x96xf32> to vector<16x32xf32>
    %7 = vector.extract_strided_slice %5 {offsets = [0, 32], sizes = [16, 32], strides = [1, 1]} : vector<16x96xf32> to vector<16x32xf32>
    %8 = vector.extract_strided_slice %5 {offsets = [0, 64], sizes = [16, 32], strides = [1, 1]} : vector<16x96xf32> to vector<16x32xf32>
    %9 = arith.negf %6 : vector<16x32xf32>
    %10 = math.exp %9 : vector<16x32xf32>
    %cst_5 = arith.constant 1.000000e+00 : f32
    %11 = vector.broadcast %cst_5 : f32 to vector<16x32xf32>
    %12 = arith.addf %11, %10 : vector<16x32xf32>
    %13 = arith.divf %11, %12 : vector<16x32xf32>
    %14 = math.tanh %7 : vector<16x32xf32>
    %15 = arith.negf %8 : vector<16x32xf32>
    %16 = math.exp %15 : vector<16x32xf32>
    %cst_6 = arith.constant 1.000000e+00 : f32
    %17 = vector.broadcast %cst_6 : f32 to vector<16x32xf32>
    %18 = arith.addf %17, %16 : vector<16x32xf32>
    %19 = arith.divf %17, %18 : vector<16x32xf32>
    %20 = arith.mulf %13, %14 : vector<16x32xf32>
    %21 = math.tanh %20 : vector<16x32xf32>
    %22 = arith.mulf %19, %21 : vector<16x32xf32>
    %23 = arith.truncf %22 : vector<16x32xf32> to vector<16x32xbf16>
    %c0_7 = arith.constant 0 : index
    %c0_8 = arith.constant 0 : index
    %24 = vector.load %arg4[%c0_7, %c0_8] : memref<32x128xbf16, #tpu.memory_space<vmem>>, vector<32x128xbf16>
    %cst_9 = arith.constant dense<0.000000e+00> : vector<16x128xf32>
    %25 = tpu.matmul %23, %24, %cst_9 {dimension_numbers = #tpu.dot_dimension_numbers<[1], [0], [0], [1], [0, 0, 1, 1], [], []>} : vector<16x32xbf16>, vector<32x128xbf16>, vector<16x128xf32> -> vector<16x128xf32>
    %c0_10 = arith.constant 0 : index
    %c0_11 = arith.constant 0 : index
    %26 = vector.load %arg5[%c0_10, %c0_11] : memref<1x128xf32, #tpu.memory_space<vmem>>, vector<1x128xf32>
    %27 = vector.broadcast %26 : vector<1x128xf32> to vector<16x128xf32>
    %28 = arith.addf %25, %27 : vector<16x128xf32>
    %cst_12 = arith.constant dense<0xFF800000> : vector<16xf32>
    %29 = vector.multi_reduction <maximumf>, %28, %cst_12 [1] : vector<16x128xf32> to vector<16xf32>
    %30 = vector.shape_cast %29 : vector<16xf32> to vector<16x1xf32>
    %31 = vector.broadcast %30 : vector<16x1xf32> to vector<16x128xf32>
    %32 = arith.subf %28, %31 : vector<16x128xf32>
    %33 = math.exp %32 : vector<16x128xf32>
    %cst_13 = arith.constant dense<0.000000e+00> : vector<16xf32>
    %34 = vector.multi_reduction <add>, %33, %cst_13 [1] : vector<16x128xf32> to vector<16xf32>
    %35 = vector.shape_cast %34 : vector<16xf32> to vector<16x1xf32>
    %36 = tpu.reciprocal %35 {approx = true} : vector<16x1xf32> -> vector<16x1xf32>
    %37 = vector.broadcast %36 : vector<16x1xf32> to vector<16x128xf32>
    %38 = arith.mulf %33, %37 : vector<16x128xf32>
    %c0_14 = arith.constant 0 : index
    %c0_15 = arith.constant 0 : index
    %39 = vector.load %arg6[%c0_14, %c0_15] : memref<16x128xf32, #tpu.memory_space<vmem>>, vector<16x128xf32>
    tpu.vector_store %arg6[%c0_14, %c0_15], %38 {strides = array<i32>} : memref<16x128xf32, #tpu.memory_space<vmem>>, vector<16x128xf32>,
    return
  }
  func.func @transform_0(%arg0: i32) -> (i32, i32) {
    %c0_i32 = arith.constant 0 : i32
    %c0_i32_0 = arith.constant 0 : i32
    return %arg0, %c0_i32 : i32, i32
  }
  func.func @transform_1(%arg0: i32) -> (i32, i32) {
    %c0_i32 = arith.constant 0 : i32
    %c0_i32_0 = arith.constant 0 : i32
    %c0_i32_1 = arith.constant 0 : i32
    return %c0_i32, %c0_i32_0 : i32, i32
  }
  func.func @transform_2(%arg0: i32) -> (i32, i32) {
    %c0_i32 = arith.constant 0 : i32
    %c0_i32_0 = arith.constant 0 : i32
    %c0_i32_1 = arith.constant 0 : i32
    return %c0_i32, %c0_i32_0 : i32, i32
  }
  func.func @transform_3(%arg0: i32) -> (i32, i32) {
    %c0_i32 = arith.constant 0 : i32
    %c0_i32_0 = arith.constant 0 : i32
    %c0_i32_1 = arith.constant 0 : i32
    return %c0_i32, %c0_i32_0 : i32, i32
  }
  func.func @transform_4(%arg0: i32) -> (i32, i32) {
    %c0_i32 = arith.constant 0 : i32
    %c0_i32_0 = arith.constant 0 : i32
    %c0_i32_1 = arith.constant 0 : i32
    return %c0_i32, %c0_i32_0 : i32, i32
  }
  func.func @transform_5(%arg0: i32) -> (i32, i32) {
    %c0_i32 = arith.constant 0 : i32
    %c0_i32_0 = arith.constant 0 : i32
    return %arg0, %c0_i32 : i32, i32
  }
}

</mosaic_0001>

<llo_original>
// kernel: tpu_custom_call.1
$region0: #{tpu_custom_call.1}
  #allocation0 [shape = 'u32[]', space=smem, size = 0x4, offset = 0x4, fixed_abs, tag = 'smem constant byte address 0x4 - core index']
  #allocation1 [shape = 'u32[144,128]{1,0:T(1,128)}', space=vmem, size = 0x12000, scoped, tag = 'internal scratch']
  %s0 = inlined_call_operand.hbm [shape: bf16[16,32], index: 0, kind: input, shape index: {}]
  %s1 = inlined_call_operand.hbm [shape: bf16[32,96], index: 1, kind: input, shape index: {}]
  %s2 = inlined_call_operand.vmem [shape: f32[1,96], index: 2, kind: input, shape index: {}]
  %s3 = inlined_call_operand.hbm [shape: bf16[32,128], index: 3, kind: input, shape index: {}]
  %s4 = inlined_call_operand.vmem [shape: f32[1,128], index: 4, kind: input, shape index: {}]
  %s5 = inlined_call_operand.hbm [shape: f32[16,128], index: 5, kind: output, shape index: {}]
  %s6 = sld [smem:[#allocation0]]
  $region42: #{tpu_custom_call.1} parent=0
    _
  %s8 = ssub.s32 1, %s6
  %s9 = scalar_select 0, %s8, %s6
  $region1: #{tpu_custom_call.1} parent=0
    #allocation2 [shape = 'u8[4096]{0}', space=vmem, size = 0x1000, scoped, tag = 'input window, operand 0, single buffered']
    #allocation3 [shape = 's32[1]{0}', space=sflag, size = 0x4, scoped, tag = 'scoped memory for tpu_custom_call.1']
    #allocation4 [shape = 's32[1]{0}', space=sflag, size = 0x4, scoped, tag = 'scoped memory for tpu_custom_call.1']
    #allocation5 [shape = 'u8[8192]{0}', space=vmem, size = 0x2000, scoped, tag = 'input window, operand 1, single buffered']
    #allocation6 [shape = 's32[1]{0}', space=sflag, size = 0x4, scoped, tag = 'scoped memory for tpu_custom_call.1']
    #allocation7 [shape = 'u8[8192]{0}', space=vmem, size = 0x2000, scoped, tag = 'input window, operand 3, single buffered']
    #allocation8 [shape = 'u8[8192]{0}', space=vmem, size = 0x2000, scoped, tag = 'output window, operand 0, single buffered']
    %10 = vsyncpa [#allocation3], 0
    %11 = vsyncpa [#allocation6], 0
    %12 = vsyncpa [#allocation4], 0
    // Predicated region
    $region2: #{tpu_custom_call.1} parent=1 // pred_check
      _
    $region3: #{tpu_custom_call.1} parent=1 // pred_check_branch
      %14 = sbr.rel (0) target = $region5
    $region4: #{tpu_custom_call.1} parent=1 // pred_region
      %s16 = ssub.s32 128, 128
      %17 = vsyncadd [#allocation3], %s16
      %s18 = sshll.u32 [#allocation2], 4
      %s19 = int_to_ptr.vmem [resolvable:$true] %s18
      %24 = dma.hbm_to_vmem [thread:$0]  %s0, 128, %s19, [#allocation3], 64, 64, 4
    $region5: #{tpu_custom_call.1} parent=1 // pred_fallthru
      _
    // Predicated region
    $region6: #{tpu_custom_call.1} parent=1 // pred_check
      _
    $region7: #{tpu_custom_call.1} parent=1 // pred_check_branch
      %26 = sbr.rel (0) target = $region9
    $region8: #{tpu_custom_call.1} parent=1 // pred_region
      %s28 = ssub.s32 256, 256
      %29 = vsyncadd [#allocation6], %s28
      %s30 = sshll.u32 [#allocation5], 4
      %s31 = int_to_ptr.vmem [resolvable:$true] %s30
      %36 = dma.hbm_to_vmem [thread:$0]  %s1, 256, %s31, [#allocation6], 64, 64, 4
    $region9: #{tpu_custom_call.1} parent=1 // pred_fallthru
      _
    // Predicated region
    $region10: #{tpu_custom_call.1} parent=1 // pred_check
      _
    $region11: #{tpu_custom_call.1} parent=1 // pred_check_branch
      %38 = sbr.rel (0) target = $region13
    $region12: #{tpu_custom_call.1} parent=1 // pred_region
      _
    $region13: #{tpu_custom_call.1} parent=1 // pred_fallthru
      _
    // Predicated region
    $region14: #{tpu_custom_call.1} parent=1 // pred_check
      _
    $region15: #{tpu_custom_call.1} parent=1 // pred_check_branch
      %40 = sbr.rel (0) target = $region17
    $region16: #{tpu_custom_call.1} parent=1 // pred_region
      %s42 = ssub.s32 256, 256
      %43 = vsyncadd [#allocation6], %s42
      %s44 = sshll.u32 [#allocation7], 4
      %s45 = int_to_ptr.vmem [resolvable:$true] %s44
      %50 = dma.hbm_to_vmem [thread:$0]  %s3, 256, %s45, [#allocation6], 64, 64, 4
    $region17: #{tpu_custom_call.1} parent=1 // pred_fallthru
      _
    // Predicated region
    $region18: #{tpu_custom_call.1} parent=1 // pred_check
      _
    $region19: #{tpu_custom_call.1} parent=1 // pred_check_branch
      %52 = sbr.rel (0) target = $region21
    $region20: #{tpu_custom_call.1} parent=1 // pred_region
      _
    $region21: #{tpu_custom_call.1} parent=1 // pred_fallthru
      _
    // Predicated region
    $region22: #{tpu_custom_call.1} parent=1 // pred_check
      _
    $region23: #{tpu_custom_call.1} parent=1 // pred_check_branch
      %54 = sbr.rel (0) target = $region25
    $region24: #{tpu_custom_call.1} parent=1 // pred_region
      %55 = dma.done [#allocation3], 128
    $region25: #{tpu_custom_call.1} parent=1 // pred_fallthru
      _
    // Predicated region
    $region26: #{tpu_custom_call.1} parent=1 // pred_check
      _
    $region27: #{tpu_custom_call.1} parent=1 // pred_check_branch
      %57 = sbr.rel (0) target = $region29
    $region28: #{tpu_custom_call.1} parent=1 // pred_region
      %58 = dma.done [#allocation6], 256
    $region29: #{tpu_custom_call.1} parent=1 // pred_fallthru
      _
    // Predicated region
    $region30: #{tpu_custom_call.1} parent=1 // pred_check
      _
    $region31: #{tpu_custom_call.1} parent=1 // pred_check_branch
      %60 = sbr.rel (0) target = $region33
    $region32: #{tpu_custom_call.1} parent=1 // pred_region
      %61 = dma.done [#allocation6], 256
    $region33: #{tpu_custom_call.1} parent=1 // pred_fallthru
      _
    %v63 = vld [vmem:[#allocation2] sm:$0xf]
    %v64 = vld [vmem:[#allocation2 + $0x4] sm:$0xf]
    %v65 = vld [vmem:[#allocation5] sm:$0xf]
    %v66 = vld [vmem:[#allocation5 + $0x4] sm:$0xf]
    %v67 = vld [vmem:[#allocation5 + $0x8] sm:$0xf]
    %v68 = vld [vmem:[#allocation5 + $0xc] sm:$0xf]
    %v69 = vld [vmem:[%s2] sm:$0x1]
    %v71 = vlaneseq
    %v72 = vshrl.u32 %v71, 7
    %v73 = vsub.s32 0, %v72
    %v74 = vrot.slane %v69, %v73
    %v78 = vunpack.c.l.b16 %v63
    %v79 = vunpack.c.l.b16 %v64
    %v80 = vpack.c.b16 %v79, %v78
    %v85 = vunpack.c.l.b16 %v65
    %v86 = vunpack.c.l.b16 %v66
    %v87 = vunpack.c.l.b16 %v67
    %v88 = vunpack.c.l.b16 %v68
    %v89 = vpack.c.b16 %v86, %v85
    %v90 = vpack.c.b16 %v88, %v87
    %vm93 = vcmask 261120
    %v95 = vsel %vm93, %v80, 0
    %97 = vmatprep.subr.bf16.mxu0 0
    %98 = vmatpush1.bf16.msra.mxu0 %v89
    %99 = vmatprep.subr.bf16.mxu0 0
    %100 = vmatpush1.bf16.msra.mxu0 %v90
    %101 = vmatprep.subr.bf16.mxu0 0
    %102 = vmatpush1.bf16.msra.mxu0 0
    %103 = vmatprep.subr.bf16.mxu0 0
    %104 = vmatpush1.bf16.msra.mxu0 0
    %105 = vmatprep.subr.bf16.mxu0 0
    %106 = vmatpush1.bf16.msra.mxu0 0
    %107 = vmatprep.subr.bf16.mxu0 0
    %108 = vmatpush1.bf16.msra.mxu0 0
    %109 = vmatprep.subr.bf16.mxu0 0
    %110 = vmatpush1.bf16.msra.mxu0 0
    %111 = vmatprep.subr.bf16.mxu0 0
    %112 = vmatpush1.bf16.msra.mxu0 0
    %113 = vmatprep.subr.bf16.mxu0 0
    %114 = vmatpush1.bf16.msra.mxu0 0
    %115 = vmatprep.subr.bf16.mxu0 0
    %116 = vmatpush1.bf16.msra.mxu0 0
    %117 = vmatprep.subr.bf16.mxu0 0
    %118 = vmatpush1.bf16.msra.mxu0 0
    %119 = vmatprep.subr.bf16.mxu0 0
    %120 = vmatpush1.bf16.msra.mxu0 0
    %121 = vmatprep.subr.bf16.mxu0 0
    %122 = vmatpush1.bf16.msra.mxu0 0
    %123 = vmatprep.subr.bf16.mxu0 0
    %124 = vmatpush1.bf16.msra.mxu0 0
    %125 = vmatprep.subr.bf16.mxu0 0
    %126 = vmatpush1.bf16.msra.mxu0 0
    %127 = vmatprep.subr.bf16.mxu0 0
    %128 = vmatpush1.bf16.msra.mxu0 0
    %129 = vmatprep.mubr.bf16.mxu0 0
    %130 = vmatmul.mubr.bf16.gmra.mrb[0].mxu0 %v95
    %v131 = vpop.f32.mrb[0].mxu0
    %v132 = vadd.f32 %v74, %v131
    %v133 = vpop.f32.mrb[0].mxu0
    %v134 = vpop.f32.mrb[0].mxu0
    %v135 = vadd.f32 %v74, %v134
    %v136 = vpop.f32.mrb[0].mxu0
    %137 = vdwg.mxu0
    %v138 = vxor.u32 %v132, 2147483648
    %v139 = vxor.u32 %v135, 2147483648
    %v140 = vmul.f32 %v138, 1.442695
    %v141 = vpow.pop %v140
    %v142 = vmul.f32 %v139, 1.442695
    %v143 = vpow.pop %v142
    %v144 = vadd.f32 %v141, 1.0
    %v145 = vadd.f32 %v143, 1.0
    %v146 = vrcp.pop %v144
    %v147 = vmul.f32 1.0, %v146
    %v148 = vrcp.pop %v145
    %v149 = vmul.f32 1.0, %v148
    %v150 = vtanh.pop %v132
    %v151 = vtanh.pop %v135
    %154 = vrot.lane.b32.xlu0 %v150, 96
    %v155 = vpop.permute.xlu0 %154
    %156 = vrot.lane.b32.xlu0 %v151, 96
    %v157 = vpop.permute.xlu0 %156
    %v160 = vmul.f32 %v147, %v155
    %v161 = vmul.f32 %v149, %v157
    %v162 = vtanh.pop %v160
    %v163 = vtanh.pop %v161
    %166 = vrot.lane.b32.xlu0 %v162, 64
    %v167 = vpop.permute.xlu0 %166
    %168 = vrot.lane.b32.xlu0 %v163, 64
    %v169 = vpop.permute.xlu0 %168
    %v172 = vmul.f32 %v147, %v167
    %v173 = vmul.f32 %v149, %v169
    %v174 = vpack.c.bf16 %v173, %v172
    %v175 = vld [vmem:[#allocation7] sm:$0xf]
    %v176 = vld [vmem:[#allocation7 + $0x4] sm:$0xf]
    %v177 = vld [vmem:[#allocation7 + $0x8] sm:$0xf]
    %v178 = vld [vmem:[#allocation7 + $0xc] sm:$0xf]
    %v179 = vld [vmem:[%s4] sm:$0x1]
    %v181 = vlaneseq
    %v182 = vshrl.u32 %v181, 7
    %v183 = vsub.s32 0, %v182
    %v184 = vrot.slane %v179, %v183
    %187 = vrot.lane.b32.xlu0 %v174, 64
    %v188 = vpop.permute.xlu0 %187
    %v193 = vunpack.c.l.b16 %v175
    %v194 = vunpack.c.l.b16 %v176
    %v195 = vunpack.c.l.b16 %v177
    %v196 = vunpack.c.l.b16 %v178
    %v197 = vpack.c.b16 %v194, %v193
    %v198 = vpack.c.b16 %v196, %v195
    %v202 = vsel %vm93, %v188, 0
    %204 = vmatprep.subr.bf16.mxu0 0
    %205 = vmatpush1.bf16.msra.mxu0 %v197
    %206 = vmatprep.subr.bf16.mxu0 0
    %207 = vmatpush1.bf16.msra.mxu0 %v198
    %208 = vmatprep.subr.bf16.mxu0 0
    %209 = vmatpush1.bf16.msra.mxu0 0
    %210 = vmatprep.subr.bf16.mxu0 0
    %211 = vmatpush1.bf16.msra.mxu0 0
    %212 = vmatprep.subr.bf16.mxu0 0
    %213 = vmatpush1.bf16.msra.mxu0 0
    %214 = vmatprep.subr.bf16.mxu0 0
    %215 = vmatpush1.bf16.msra.mxu0 0
    %216 = vmatprep.subr.bf16.mxu0 0
    %217 = vmatpush1.bf16.msra.mxu0 0
    %218 = vmatprep.subr.bf16.mxu0 0
    %219 = vmatpush1.bf16.msra.mxu0 0
    %220 = vmatprep.subr.bf16.mxu0 0
    %221 = vmatpush1.bf16.msra.mxu0 0
    %222 = vmatprep.subr.bf16.mxu0 0
    %223 = vmatpush1.bf16.msra.mxu0 0
    %224 = vmatprep.subr.bf16.mxu0 0
    %225 = vmatpush1.bf16.msra.mxu0 0
    %226 = vmatprep.subr.bf16.mxu0 0
    %227 = vmatpush1.bf16.msra.mxu0 0
    %228 = vmatprep.subr.bf16.mxu0 0
    %229 = vmatpush1.bf16.msra.mxu0 0
    %230 = vmatprep.subr.bf16.mxu0 0
    %231 = vmatpush1.bf16.msra.mxu0 0
    %232 = vmatprep.subr.bf16.mxu0 0
    %233 = vmatpush1.bf16.msra.mxu0 0
    %234 = vmatprep.subr.bf16.mxu0 0
    %235 = vmatpush1.bf16.msra.mxu0 0
    %236 = vmatprep.mubr.bf16.mxu0 0
    %237 = vmatmul.mubr.bf16.gmra.mrb[0].mxu0 %v202
    %v238 = vpop.f32.mrb[0].mxu0
    %v239 = vadd.f32 %v184, %v238
    %v240 = vpop.f32.mrb[0].mxu0
    %v241 = vpop.f32.mrb[0].mxu0
    %v242 = vadd.f32 %v184, %v241
    %v243 = vpop.f32.mrb[0].mxu0
    %244 = vdwg.mxu0
    %245 = vmax.xlane.f32.xlu0 %v239
    %v246 = vpop.xlane.xlu0 %245
    %247 = vmax.xlane.f32.xlu0 %v242
    %v248 = vpop.xlane.xlu0 %247
    %v249 = vsub.f32 %v239, %v246
    %v250 = vsub.f32 %v242, %v248
    %v251 = vmul.f32 %v249, 1.442695
    %v252 = vpow.pop %v251
    %v253 = vmul.f32 %v250, 1.442695
    %v254 = vpow.pop %v253
    %255 = vadd.xlane.f32.xlu0 %v252
    %v256 = vpop.xlane.xlu0 %255
    %257 = vadd.xlane.f32.xlu0 %v254
    %v258 = vpop.xlane.xlu0 %257
    %v259 = vrcp.pop %v256
    %v260 = vrcp.pop %v258
    %v261 = vmul.f32 %v252, %v259
    %v262 = vmul.f32 %v254, %v260
    %263 = vst [vmem:[#allocation8] sm:$0xff] %v261
    %264 = vst [vmem:[#allocation8 + $0x8] sm:$0xff] %v262
    // Predicated region
    $region34: #{tpu_custom_call.1} parent=1 // pred_check
      _
    $region35: #{tpu_custom_call.1} parent=1 // pred_check_branch
      %266 = sbr.rel (0) target = $region37
    $region36: #{tpu_custom_call.1} parent=1 // pred_region
      %s268 = ssub.s32 256, 256
      %269 = vsyncadd [#allocation4], %s268
      %s270 = sshll.u32 [#allocation8], 4
      %s271 = int_to_ptr.vmem [resolvable:$true] %s270
      %276 = dma.vmem_to_hbm [thread:$0]  %s271, 256, %s5, [#allocation4], 128, 128, 8
    $region37: #{tpu_custom_call.1} parent=1 // pred_fallthru
      _
    // Predicated region
    $region38: #{tpu_custom_call.1} parent=1 // pred_check
      _
    $region39: #{tpu_custom_call.1} parent=1 // pred_check_branch
      %278 = sbr.rel (0) target = $region41
    $region40: #{tpu_custom_call.1} parent=1 // pred_region
      %279 = dma.done [#allocation4], 256
    $region41: #{tpu_custom_call.1} parent=1 // pred_fallthru
      _
    %280 = vsyncpa [#allocation3], 1
    %281 = vsyncpa [#allocation6], 1
    %282 = vsyncpa [#allocation4], 1

</llo_original>
